<compile_context>
chip_gen: v6e
topology: v6e:2x2x1
jax: 0.10.0
libtpu: 0.0.40
codegen_flags: <defaults>
</compile_context>

<pallas_src>
import functools

import jax
import jax.numpy as jnp
from jax.experimental import pallas as pl
from jax.experimental.pallas import tpu as pltpu


def _cdiv(a: int, b: int) -> int:
    return -(-a // b)


def _round_up(x: int, m: int) -> int:
    return ((x + m - 1) // m) * m


def _round_down(x: int, m: int) -> int:
    return (x // m) * m


def _vmem_physical_bytes() -> int:
    """Per-core physical VMEM; conservative fallback (v7x = 64 MiB)."""
    try:
        info = pltpu.get_tpu_info()
        cap = getattr(info, "vmem_capacity_bytes", None)
        if cap:
            return int(cap)
    except Exception:
        pass
    return 64 * 1024 * 1024


def _choose_m_chunk(M: int, Dm: int, w_itemsize: int,
                    budget: int = 2 * 1024 * 1024) -> int:
    """Largest M-chunk Mc with M % Mc == 0, lane-aligned blocks, and a
    per-chunk block-diagonal weight (Mc*Dm, Mc) under `budget` bytes."""
    if M * Dm * M * w_itemsize <= budget:
        return M                      # single chunk, blocks equal full dims
    best = None
    mc = 128                          # multiples of 128 keep lane alignment
    while mc < M:
        if M % mc == 0 and mc * Dm * mc * w_itemsize <= budget:
            best = mc
        mc += 128
    return best if best is not None else M


# ----------------------------- kernel ---------------------------------------


def _classifier_kernel(feat_ref, marg_ref, wft_ref, wmbd_ref, bias_ref,
                       out_ref, *, precision):
    # (tb, Df) @ (Df, Mc)  +  (tb, Mc*Dm) @ (Mc*Dm, Mc)  -- both MXU, f32 acc.
    t = jnp.dot(feat_ref[...], wft_ref[...],
                preferred_element_type=jnp.float32, precision=precision)
    t = t + jnp.dot(marg_ref[...], wmbd_ref[...],
                    preferred_element_type=jnp.float32, precision=precision)
    out_ref[...] = (t + bias_ref[...]).astype(out_ref.dtype)


# ----------------------------- wrapper --------------------------------------


def classifier_forward(features, marginal_block, weight, bias, *,
                       tb=None, precision=None):
    """features (B, Df), marginal_block (B, M, Dm), weight (M, Df+Dm, 1),
    bias (M, 1, 1) -> (B, M)."""
    B, Df = features.shape
    _, M, Dm = marginal_block.shape
    assert weight.shape == (M, Df + Dm, 1)
    dtype = features.dtype
    itemsize = jnp.dtype(dtype).itemsize
    w_itemsize = jnp.dtype(weight.dtype).itemsize

    # ---- weight prep (once, outside the kernel; no in-kernel transposes) ----
    wf_t = jnp.transpose(weight[:, :Df, 0])               # (Df, M)
    wm = weight[:, Df:, 0]                                 # (M, Dm)
    bias2 = bias.reshape(1, M)                             # (1, M)

    # ---- M chunking: block-diag weight always small enough for VMEM --------
    Mc = _choose_m_chunk(M, Dm, w_itemsize)
    nm = M // Mc
    eye = jnp.eye(Mc, dtype=wm.dtype)
    # wm_bd[j, m*Dm + d, m'] = wm[j*Mc + m, d] if m == m' else 0
    wm_bd = (wm.reshape(nm, Mc, Dm)[:, :, :, None]
             * eye[None, :, None, :]).reshape(nm, Mc * Dm, Mc)
    marg_flat = marginal_block.reshape(B, M * Dm)          # contiguous => free

    # ---- per-generation VMEM budget & batch tile size -----------------------
    physical = _vmem_physical_bytes()
    budget = max(12 << 20, physical * 3 // 8)   # ~24 MiB v7x, ~48 MiB v5e/v6e
    # Resident (double-buffered) per-chunk weights + bias -- now accounted for.
    weight_resident = 2 * (w_itemsize * (Df * Mc + Mc * Dm * Mc)
                           + itemsize * Mc)
    # Streamed bytes per batch row per grid step (in + out, double-buffered x2).
    row_stream = itemsize * (Df + Mc * Dm + Mc)

    if tb is None:
        avail = max(budget - weight_resident, 4 << 20)
        tb_vmem = avail // (2 * row_stream)
        tb_bw = max(256, (2 << 20) // row_stream)          # ~2 MiB / step
        tb = min(tb_bw, tb_vmem, 8192)
        if B > 8:
            # Prefer >= ~8 grid steps (v7x megacore needs >= 2; more gives
            # pipeline depth) but never shrink below ~1 MiB streamed per step.
            min_bw_rows = max(256, (1 << 20) // row_stream)
            tb = min(tb, max(_cdiv(B, 8), min_bw_rows))

    if B <= 8:
        tb = B                                             # one full-batch block
    else:
        tb = max(8, _round_down(min(int(tb), _round_down(B, 8)), 8))

    grid_b = _cdiv(B, tb)                                  # partial last block OK

    footprint = 2 * row_stream * tb + weight_resident
    vmem_limit = int(min(max(footprint + (8 << 20), 16 << 20),
                         physical * 3 // 4))

    cost = pl.CostEstimate(
        flops=2 * B * M * (Df + Dm),
        transcendentals=0,
        bytes_accessed=(itemsize * (B * Df * nm + B * M * Dm + B * M + M)
                        + w_itemsize * (Df * M + M * Dm * Mc)),
    )
    cparams = pltpu.CompilerParams(
        dimension_semantics=("parallel", "parallel"),
        vmem_limit_bytes=vmem_limit,
    )

    kernel = functools.partial(_classifier_kernel, precision=precision)

    out = pl.pallas_call(
        kernel,
        out_shape=jax.ShapeDtypeStruct((B, M), dtype),
        grid_spec=pltpu.PrefetchScalarGridSpec(
            num_scalar_prefetch=0,
            grid=(nm, grid_b),                    # batch axis innermost/fastest
            in_specs=[
                pl.BlockSpec((tb, Df), lambda j, i: (i, 0)),
                pl.BlockSpec((tb, Mc * Dm), lambda j, i: (i, j)),
                pl.BlockSpec((Df, Mc), lambda j, i: (0, j)),
                pl.BlockSpec((None, Mc * Dm, Mc), lambda j, i: (j, 0, 0)),
                pl.BlockSpec((1, Mc), lambda j, i: (0, j)),
            ],
            out_specs=pl.BlockSpec((tb, Mc), lambda j, i: (i, j)),
        ),
        compiler_params=cparams,
        cost_estimate=cost,
    )(features, marg_flat, wf_t, wm_bd, bias2)

    return out


# ----------------------------- reference ------------------------------------


def classifier_reference(features, marginal_block, weight, bias):
    B, Df = features.shape
    _, M, Dm = marginal_block.shape
    fb = jnp.broadcast_to(features[:, None, :], (B, M, Df))
    combined = jnp.concatenate([fb, marginal_block], axis=2)        # (B, M, C)
    out = jnp.einsum("bmc,mc->bm", combined, weight[:, :, 0])
    return out + bias[:, 0, 0][None, :]                             # (B, M)


if __name__ == "__main__":
    # Small shapes: batch=8, n_marginals=4, per-sample feature dim=16,
    # per-marginal feature dim=16  =>  n_combined_features = 32.
    B, M, Df, Dm = 8, 4, 16, 16
    C = Df + Dm

    key = jax.random.PRNGKey(0)
    k_feat, k_marg, k_w, k_b = jax.random.split(key, 4)

    features = jax.random.normal(k_feat, (B, Df), dtype=jnp.float32)
    marginal_block = jax.random.normal(k_marg, (B, M, Dm), dtype=jnp.float32)
    weight = jax.random.normal(k_w, (M, C, 1), dtype=jnp.float32) * 0.1
    bias = jax.random.normal(k_b, (M, 1, 1), dtype=jnp.float32) * 0.1

    out = jax.block_until_ready(
        classifier_forward(features, marginal_block, weight, bias))
    ref = classifier_reference(features, marginal_block, weight, bias)
    assert out.shape == (B, M)
    # Tolerance covers the default-precision f32 MXU passes.
    assert jnp.allclose(out, ref, atol=1e-3, rtol=1e-3), "mismatch (small)"

    # Larger batch: exercises the streamed grid without any jnp.pad copy.
    B2 = 1000
    f2 = jax.random.normal(jax.random.PRNGKey(1), (B2, Df), dtype=jnp.float32)
    m2 = jax.random.normal(jax.random.PRNGKey(2), (B2, M, Dm), dtype=jnp.float32)
    out2 = jax.block_until_ready(classifier_forward(f2, m2, weight, bias))
    ref2 = classifier_reference(f2, m2, weight, bias)
    assert out2.shape == (B2, M)
    assert jnp.allclose(out2, ref2, atol=1e-3, rtol=1e-3), "mismatch (large)"

    # Ragged, non-multiple-of-8 batch: clipped boundary block, no padding pass.
    B3 = 37
    f3 = jax.random.normal(jax.random.PRNGKey(3), (B3, Df), dtype=jnp.float32)
    m3 = jax.random.normal(jax.random.PRNGKey(4), (B3, M, Dm), dtype=jnp.float32)
    out3 = jax.block_until_ready(classifier_forward(f3, m3, weight, bias))
    ref3 = classifier_reference(f3, m3, weight, bias)
    assert out3.shape == (B3, M)
    assert jnp.allclose(out3, ref3, atol=1e-3, rtol=1e-3), "mismatch (ragged)"

    print("KERNEL_OK")
</pallas_src>

<mosaic_0001>
module attributes {stable_mosaic.version = 11 : i64} {
  func.func @_classifier_kernel(%arg0: i32, %arg1: i32, %arg2: memref<8x16xf32, #tpu.memory_space<vmem>>, %arg3: memref<8x64xf32, #tpu.memory_space<vmem>>, %arg4: memref<16x4xf32, #tpu.memory_space<vmem>>, %arg5: memref<1x64x4xf32, #tpu.memory_space<vmem>>, %arg6: memref<1x4xf32, #tpu.memory_space<vmem>>, %arg7: memref<8x4xf32, #tpu.memory_space<vmem>>) attributes {dimension_semantics = [#tpu.dimension_semantics<parallel>, #tpu.dimension_semantics<parallel>], iteration_bounds = array<i64: 1, 1>, scalar_prefetch = 0 : i64, scratch_operands = 0 : i64, tpu.core_type = #tpu.core_type<tc>, window_params = [{transform_indices = @transform_0, window_bounds = array<i64: 8, 16>}, {transform_indices = @transform_1, window_bounds = array<i64: 8, 64>}, {transform_indices = @transform_2, window_bounds = array<i64: 16, 4>}, {transform_indices = @transform_3, window_bounds = array<i64: 1, 64, 4>}, {transform_indices = @transform_4, window_bounds = array<i64: 1, 4>}, {transform_indices = @transform_5, window_bounds = array<i64: 8, 4>}]} {
    %c0 = arith.constant 0 : index
    %c0_0 = arith.constant 0 : index
    %0 = vector.load %arg2[%c0, %c0_0] : memref<8x16xf32, #tpu.memory_space<vmem>>, vector<8x16xf32>
    %c0_1 = arith.constant 0 : index
    %c0_2 = arith.constant 0 : index
    %1 = vector.load %arg4[%c0_1, %c0_2] : memref<16x4xf32, #tpu.memory_space<vmem>>, vector<16x4xf32>
    %cst = arith.constant dense<0.000000e+00> : vector<8x4xf32>
    %2 = tpu.matmul %0, %1, %cst {dimension_numbers = #tpu.dot_dimension_numbers<[1], [0], [0], [1], [0, 0, 1, 1], [], []>} : vector<8x16xf32>, vector<16x4xf32>, vector<8x4xf32> -> vector<8x4xf32>
    %c0_3 = arith.constant 0 : index
    %c0_4 = arith.constant 0 : index
    %3 = vector.load %arg3[%c0_3, %c0_4] : memref<8x64xf32, #tpu.memory_space<vmem>>, vector<8x64xf32>
    %c0_5 = arith.constant 0 : index
    %c0_6 = arith.constant 0 : index
    %c0_7 = arith.constant 0 : index
    %4 = vector.load %arg5[%c0_5, %c0_6, %c0_7] : memref<1x64x4xf32, #tpu.memory_space<vmem>>, vector<1x64x4xf32>
    %5 = vector.shape_cast %4 : vector<1x64x4xf32> to vector<64x4xf32>
    %cst_8 = arith.constant dense<0.000000e+00> : vector<8x4xf32>
    %6 = tpu.matmul %3, %5, %cst_8 {dimension_numbers = #tpu.dot_dimension_numbers<[1], [0], [0], [1], [0, 0, 1, 1], [], []>} : vector<8x64xf32>, vector<64x4xf32>, vector<8x4xf32> -> vector<8x4xf32>
    %7 = arith.addf %2, %6 : vector<8x4xf32>
    %c0_9 = arith.constant 0 : index
    %c0_10 = arith.constant 0 : index
    %8 = vector.load %arg6[%c0_9, %c0_10] : memref<1x4xf32, #tpu.memory_space<vmem>>, vector<1x4xf32>
    %9 = vector.broadcast %8 : vector<1x4xf32> to vector<8x4xf32>
    %10 = arith.addf %7, %9 : vector<8x4xf32>
    %c0_11 = arith.constant 0 : index
    %c0_12 = arith.constant 0 : index
    %11 = vector.load %arg7[%c0_11, %c0_12] : memref<8x4xf32, #tpu.memory_space<vmem>>, vector<8x4xf32>
    tpu.vector_store %arg7[%c0_11, %c0_12], %10 {strides = array<i32>} : memref<8x4xf32, #tpu.memory_space<vmem>>, vector<8x4xf32>,
    return
  }
  func.func @transform_0(%arg0: i32, %arg1: i32) -> (i32, i32) {
    %c0_i32 = arith.constant 0 : i32
    %c0_i32_0 = arith.constant 0 : i32
    return %arg1, %c0_i32 : i32, i32
  }
  func.func @transform_1(%arg0: i32, %arg1: i32) -> (i32, i32) {
    %c0_i32 = arith.constant 0 : i32
    return %arg1, %arg0 : i32, i32
  }
  func.func @transform_2(%arg0: i32, %arg1: i32) -> (i32, i32) {
    %c0_i32 = arith.constant 0 : i32
    %c0_i32_0 = arith.constant 0 : i32
    return %c0_i32, %arg0 : i32, i32
  }
  func.func @transform_3(%arg0: i32, %arg1: i32) -> (i32, i32, i32) {
    %c0_i32 = arith.constant 0 : i32
    %c0_i32_0 = arith.constant 0 : i32
    %c0_i32_1 = arith.constant 0 : i32
    return %arg0, %c0_i32, %c0_i32_0 : i32, i32, i32
  }
  func.func @transform_4(%arg0: i32, %arg1: i32) -> (i32, i32) {
    %c0_i32 = arith.constant 0 : i32
    %c0_i32_0 = arith.constant 0 : i32
    return %c0_i32, %arg0 : i32, i32
  }
  func.func @transform_5(%arg0: i32, %arg1: i32) -> (i32, i32) {
    %c0_i32 = arith.constant 0 : i32
    return %arg1, %arg0 : i32, i32
  }
}

</mosaic_0001>

<llo_original>
// kernel: tpu_custom_call.1
$region0: #{tpu_custom_call.1}
  #allocation0 [shape = 'u32[]', space=smem, size = 0x4, offset = 0x4, fixed_abs, tag = 'smem constant byte address 0x4 - core index']
  #allocation1 [shape = 'u32[144,128]{1,0:T(1,128)}', space=vmem, size = 0x12000, scoped, tag = 'internal scratch']
  %s0 = inlined_call_operand.vmem [shape: f32[8,16], index: 0, kind: input, shape index: {}]
  %s1 = inlined_call_operand.vmem [shape: f32[8,64], index: 1, kind: input, shape index: {}]
  %s2 = inlined_call_operand.vmem [shape: f32[16,4], index: 2, kind: input, shape index: {}]
  %s3 = inlined_call_operand.vmem [shape: f32[1,64,4], index: 3, kind: input, shape index: {}]
  %s4 = inlined_call_operand.vmem [shape: f32[1,4], index: 4, kind: input, shape index: {}]
  %s5 = inlined_call_operand.vmem [shape: f32[8,4], index: 5, kind: output, shape index: {}]
  %s6 = sld [smem:[#allocation0]]
  $region30: #{tpu_custom_call.1} parent=0
    _
  %s8 = ssub.s32 1, %s6
  %s9 = scalar_select 0, %s8, %s6
  // Predicated region
  $region2: #{tpu_custom_call.1} parent=0 // pred_check
    _
  $region3: #{tpu_custom_call.1} parent=0 // pred_check_branch
    %11 = sbr.rel (0) target = $region5
  $region4: #{tpu_custom_call.1} parent=0 // pred_region
    _
  $region5: #{tpu_custom_call.1} parent=0 // pred_fallthru
    _
  // Predicated region
  $region6: #{tpu_custom_call.1} parent=0 // pred_check
    _
  $region7: #{tpu_custom_call.1} parent=0 // pred_check_branch
    %13 = sbr.rel (0) target = $region9
  $region8: #{tpu_custom_call.1} parent=0 // pred_region
    _
  $region9: #{tpu_custom_call.1} parent=0 // pred_fallthru
    _
  // Predicated region
  $region10: #{tpu_custom_call.1} parent=0 // pred_check
    _
  $region11: #{tpu_custom_call.1} parent=0 // pred_check_branch
    %15 = sbr.rel (0) target = $region13
  $region12: #{tpu_custom_call.1} parent=0 // pred_region
    _
  $region13: #{tpu_custom_call.1} parent=0 // pred_fallthru
    _
  // Predicated region
  $region14: #{tpu_custom_call.1} parent=0 // pred_check
    _
  $region15: #{tpu_custom_call.1} parent=0 // pred_check_branch
    %17 = sbr.rel (0) target = $region17
  $region16: #{tpu_custom_call.1} parent=0 // pred_region
    _
  $region17: #{tpu_custom_call.1} parent=0 // pred_fallthru
    _
  // Predicated region
  $region18: #{tpu_custom_call.1} parent=0 // pred_check
    _
  $region19: #{tpu_custom_call.1} parent=0 // pred_check_branch
    %19 = sbr.rel (0) target = $region21
  $region20: #{tpu_custom_call.1} parent=0 // pred_region
    _
  $region21: #{tpu_custom_call.1} parent=0 // pred_fallthru
    _
  %v20 = vld [vmem:[%s0] sm:$0xff]
  %v21 = vld [vmem:[%s2] sm:$0xff]
  %v22 = vld [vmem:[%s2 + $0x8] sm:$0xff]
  %v23 = vld [vmem:[%s1] sm:$0xff]
  %v24 = vld [vmem:[%s3] sm:$0xff]
  %v25 = vld [vmem:[%s3 + $0x8] sm:$0xff]
  %v26 = vld [vmem:[%s3 + $0x10] sm:$0xff]
  %v27 = vld [vmem:[%s3 + $0x18] sm:$0xff]
  %v28 = vld [vmem:[%s3 + $0x20] sm:$0xff]
  %v29 = vld [vmem:[%s3 + $0x28] sm:$0xff]
  %v30 = vld [vmem:[%s3 + $0x30] sm:$0xff]
  %v31 = vld [vmem:[%s3 + $0x38] sm:$0xff]
  %vm32 = vcmask 523264
  %v34 = vsel %vm32, %v23, 0
  %36 = vmatprep.subr.mxu0 0.0
  %37 = vmatpush1.msra.mxu0 0.0
  %38 = vmatprep.subr.mxu0 0.0
  %39 = vmatpush1.msra.mxu0 0.0
  %40 = vmatprep.subr.mxu0 0.0
  %41 = vmatpush1.msra.mxu0 0.0
  %42 = vmatprep.subr.mxu0 0.0
  %43 = vmatpush1.msra.mxu0 0.0
  %44 = vmatprep.subr.mxu0 0.0
  %45 = vmatpush1.msra.mxu0 0.0
  %46 = vmatprep.subr.mxu0 0.0
  %47 = vmatpush1.msra.mxu0 0.0
  %48 = vmatprep.subr.mxu0 0.0
  %49 = vmatpush1.msra.mxu0 0.0
  %50 = vmatprep.subr.mxu0 0.0
  %51 = vmatpush1.msra.mxu0 0.0
  %52 = vmatprep.subr.mxu0 0.0
  %53 = vmatpush1.msra.mxu0 %v31
  %54 = vmatprep.subr.mxu0 0.0
  %55 = vmatpush1.msra.mxu0 %v30
  %56 = vmatprep.subr.mxu0 0.0
  %57 = vmatpush1.msra.mxu0 %v29
  %58 = vmatprep.subr.mxu0 0.0
  %59 = vmatpush1.msra.mxu0 %v28
  %60 = vmatprep.subr.mxu0 0.0
  %61 = vmatpush1.msra.mxu0 %v27
  %62 = vmatprep.subr.mxu0 0.0
  %63 = vmatpush1.msra.mxu0 %v26
  %64 = vmatprep.subr.mxu0 0.0
  %65 = vmatpush1.msra.mxu0 %v25
  %66 = vmatprep.subr.mxu0 0.0
  %67 = vmatpush1.msra.mxu0 %v24
  %68 = vmatprep.subr.mxu0 0.0
  %69 = vmatpush2.msra.mxu0 0.0
  %70 = vmatprep.subr.mxu0 0.0
  %71 = vmatpush2.msra.mxu0 0.0
  %72 = vmatprep.subr.mxu0 0.0
  %73 = vmatpush2.msra.mxu0 0.0
  %74 = vmatprep.subr.mxu0 0.0
  %75 = vmatpush2.msra.mxu0 0.0
  %76 = vmatprep.subr.mxu0 0.0
  %77 = vmatpush2.msra.mxu0 0.0
  %78 = vmatprep.subr.mxu0 0.0
  %79 = vmatpush2.msra.mxu0 0.0
  %80 = vmatprep.subr.mxu0 0.0
  %81 = vmatpush2.msra.mxu0 0.0
  %82 = vmatprep.subr.mxu0 0.0
  %83 = vmatpush2.msra.mxu0 0.0
  %84 = vmatprep.subr.mxu0 0.0
  %85 = vmatpush2.msra.mxu0 0.0
  %86 = vmatprep.subr.mxu0 0.0
  %87 = vmatpush2.msra.mxu0 0.0
  %88 = vmatprep.subr.mxu0 0.0
  %89 = vmatpush2.msra.mxu0 0.0
  %90 = vmatprep.subr.mxu0 0.0
  %91 = vmatpush2.msra.mxu0 0.0
  %92 = vmatprep.subr.mxu0 0.0
  %93 = vmatpush2.msra.mxu0 0.0
  %94 = vmatprep.subr.mxu0 0.0
  %95 = vmatpush2.msra.mxu0 0.0
  %96 = vmatprep.subr.mxu0 0.0
  %97 = vmatpush2.msra.mxu0 0.0
  %98 = vmatprep.subr.mxu0 0.0
  %99 = vmatpush2.msra.mxu0 0.0
  %100 = vmatprep.mubr.f32.mxu0 0.0
  %101 = vmatmul.mubr.f32.gmra.mxu0 %v34
  %v102 = vpop.f32.mrf.mxu0
  %v103 = vadd.f32 0.0, %v102
  %v104 = vpop.f32.mrf.mxu0
  %105 = vdwg.mxu0
  %vm106 = vcmask 130048
  %v108 = vsel %vm106, %v20, 0
  %110 = vmatprep.subr.mxu0 0.0
  %111 = vmatpush1.msra.mxu0 0.0
  %112 = vmatprep.subr.mxu0 0.0
  %113 = vmatpush1.msra.mxu0 0.0
  %114 = vmatprep.subr.mxu0 0.0
  %115 = vmatpush1.msra.mxu0 0.0
  %116 = vmatprep.subr.mxu0 0.0
  %117 = vmatpush1.msra.mxu0 0.0
  %118 = vmatprep.subr.mxu0 0.0
  %119 = vmatpush1.msra.mxu0 0.0
  %120 = vmatprep.subr.mxu0 0.0
  %121 = vmatpush1.msra.mxu0 0.0
  %122 = vmatprep.subr.mxu0 0.0
  %123 = vmatpush1.msra.mxu0 0.0
  %124 = vmatprep.subr.mxu0 0.0
  %125 = vmatpush1.msra.mxu0 0.0
  %126 = vmatprep.subr.mxu0 0.0
  %127 = vmatpush1.msra.mxu0 0.0
  %128 = vmatprep.subr.mxu0 0.0
  %129 = vmatpush1.msra.mxu0 0.0
  %130 = vmatprep.subr.mxu0 0.0
  %131 = vmatpush1.msra.mxu0 0.0
  %132 = vmatprep.subr.mxu0 0.0
  %133 = vmatpush1.msra.mxu0 0.0
  %134 = vmatprep.subr.mxu0 0.0
  %135 = vmatpush1.msra.mxu0 0.0
  %136 = vmatprep.subr.mxu0 0.0
  %137 = vmatpush1.msra.mxu0 0.0
  %138 = vmatprep.subr.mxu0 0.0
  %139 = vmatpush1.msra.mxu0 %v22
  %140 = vmatprep.subr.mxu0 0.0
  %141 = vmatpush1.msra.mxu0 %v21
  %142 = vmatprep.subr.mxu0 0.0
  %143 = vmatpush2.msra.mxu0 0.0
  %144 = vmatprep.subr.mxu0 0.0
  %145 = vmatpush2.msra.mxu0 0.0
  %146 = vmatprep.subr.mxu0 0.0
  %147 = vmatpush2.msra.mxu0 0.0
  %148 = vmatprep.subr.mxu0 0.0
  %149 = vmatpush2.msra.mxu0 0.0
  %150 = vmatprep.subr.mxu0 0.0
  %151 = vmatpush2.msra.mxu0 0.0
  %152 = vmatprep.subr.mxu0 0.0
  %153 = vmatpush2.msra.mxu0 0.0
  %154 = vmatprep.subr.mxu0 0.0
  %155 = vmatpush2.msra.mxu0 0.0
  %156 = vmatprep.subr.mxu0 0.0
  %157 = vmatpush2.msra.mxu0 0.0
  %158 = vmatprep.subr.mxu0 0.0
  %159 = vmatpush2.msra.mxu0 0.0
  %160 = vmatprep.subr.mxu0 0.0
  %161 = vmatpush2.msra.mxu0 0.0
  %162 = vmatprep.subr.mxu0 0.0
  %163 = vmatpush2.msra.mxu0 0.0
  %164 = vmatprep.subr.mxu0 0.0
  %165 = vmatpush2.msra.mxu0 0.0
  %166 = vmatprep.subr.mxu0 0.0
  %167 = vmatpush2.msra.mxu0 0.0
  %168 = vmatprep.subr.mxu0 0.0
  %169 = vmatpush2.msra.mxu0 0.0
  %170 = vmatprep.subr.mxu0 0.0
  %171 = vmatpush2.msra.mxu0 0.0
  %172 = vmatprep.subr.mxu0 0.0
  %173 = vmatpush2.msra.mxu0 0.0
  %174 = vmatprep.mubr.f32.mxu0 0.0
  %175 = vmatmul.mubr.f32.gmra.mxu0 %v108
  %v176 = vpop.f32.mrf.mxu0
  %v177 = vadd.f32 %v103, %v176
  %v178 = vpop.f32.mrf.mxu0
  %179 = vdwg.mxu0
  %v180 = vld [vmem:[%s4] sm:$0x1]
  %v182 = vlaneseq
  %v183 = vshrl.u32 %v182, 7
  %v184 = vsub.s32 0, %v183
  %v185 = vrot.slane %v180, %v184
  %v187 = vadd.f32 %v177, %v185
  %vm188 = vcmask 31744
  %189 = vst.msk [vmem:[%s5] sm:$0xff] %vm188, %v187
  // Predicated region
  $region22: #{tpu_custom_call.1} parent=0 // pred_check
    _
  $region23: #{tpu_custom_call.1} parent=0 // pred_check_branch
    %191 = sbr.rel (0) target = $region25
  $region24: #{tpu_custom_call.1} parent=0 // pred_region
    _
  $region25: #{tpu_custom_call.1} parent=0 // pred_fallthru
    _
  // Predicated region
  $region26: #{tpu_custom_call.1} parent=0 // pred_check
    _
  $region27: #{tpu_custom_call.1} parent=0 // pred_check_branch
    %193 = sbr.rel (0) target = $region29
  $region28: #{tpu_custom_call.1} parent=0 // pred_region
    _
  $region29: #{tpu_custom_call.1} parent=0 // pred_fallthru
    _

</llo_original>
